<compile_context>
chip_gen: v5e
topology: v5e:2x2
jax: 0.10.0
libtpu: 0.0.40
codegen_flags: <defaults>
</compile_context>

<pallas_src>
import math
import functools

import jax
import jax.numpy as jnp
from jax.experimental import pallas as pl
from jax.experimental.pallas import tpu as pltpu


# -----------------------------------------------------------------------------
# Kernel: purely elementwise scale-and-add.
#   x_ref: (B_TILE, F_TILE)   pe_ref: (1, F_TILE)   o_ref: (B_TILE, F_TILE)
# The (1, F_TILE) pe block broadcasts over the sublane (row) axis for free.
# -----------------------------------------------------------------------------
def _pe_kernel(x_ref, pe_ref, o_ref, *, scale):
    x = x_ref[...].astype(pe_ref.dtype)          # compute dtype == pe dtype
    o_ref[...] = (x * scale + pe_ref[...]).astype(o_ref.dtype)


def make_pe_matrix(seq_len: int, d_model: int) -> jnp.ndarray:
    """Positional-encoding table matching the PyTorch __init__ loop exactly."""
    pos = jnp.arange(seq_len, dtype=jnp.float32)[:, None]          # (seq_len, 1)
    i = jnp.arange(d_model, dtype=jnp.float32)[None, :]            # (1, d_model)
    angle = pos / jnp.power(10000.0, 2.0 * i / float(d_model))     # (seq_len, d_model)
    i_int = jnp.arange(d_model)[None, :]
    pe = jnp.where(i_int % 2 == 0, jnp.sin(angle), jnp.cos(angle))
    return pe.astype(jnp.float32)


def _device_tuning():
    """(target block bytes, is_v5e) picked from the attached TPU generation."""
    kind = ""
    try:
        kind = jax.devices()[0].device_kind.lower()
    except Exception:
        pass
    is_v5e = ("v5 lite" in kind) or ("v5e" in kind) or ("v5litepod" in kind)
    if is_v5e:
        target = 2 << 20       # 0.82 TB/s: 2 MiB blocks already ~85-90% of roofline
    elif "v7" in kind:
        target = 6 << 20       # 3.2 TB/s: bigger blocks to amortize ~0.35 us/step
    else:
        target = 4 << 20       # v6e / default
    return target, is_v5e


def _choose_tiles(batch, feat_p, itemsize, sublane, target_bytes):
    """Pick (b_tile, f_tile): b_tile multiple of the dtype sublane tile (or == batch),
    f_tile multiple of 128 (feat_p already lane-padded), block ~= target_bytes."""
    bytes_per_row = feat_p * itemsize
    # batch tile
    if batch <= sublane:
        b_tile = batch                                     # full (small) batch axis
    else:
        rows = int(target_bytes // bytes_per_row)
        rows = (rows // sublane) * sublane
        cap = (batch // sublane) * sublane
        b_tile = max(sublane, min(cap, rows))
    # feature tile
    blk_bytes = b_tile * bytes_per_row
    if blk_bytes <= target_bytes:
        f_tile = feat_p
    else:
        lanes = int(target_bytes // (b_tile * itemsize))
        lanes = (lanes // 128) * 128
        f_tile = max(128, min(feat_p, lanes))
    return b_tile, f_tile


def positional_encoder(x: jnp.ndarray, pe: jnp.ndarray, d_model: int, *,
                       force_pallas: bool = False,
                       min_pallas_bytes: int = 1 << 20) -> jnp.ndarray:
    """x: (batch, seq_len, d_model); pe: (seq_len, d_model) float32."""
    batch, seq_len, dm = x.shape
    assert pe.shape == (seq_len, dm) and dm == d_model
    scale = math.sqrt(float(d_model))

    target_block_bytes, is_v5e = _device_tuning()

    # Compute dtype: bf16 stays bf16 on chips with a bf16 VPU (v6e/v7x), else f32.
    if x.dtype == jnp.bfloat16 and not is_v5e:
        compute_dtype = jnp.bfloat16
    else:
        compute_dtype = jnp.float32

    itemsize = jnp.dtype(x.dtype).itemsize
    total_bytes = batch * seq_len * dm * itemsize

    # Tiny inputs: kernel launch + DMA setup dwarfs the useful traffic; let XLA
    # fuse the elementwise op instead.
    if total_bytes < min_pallas_bytes and not force_pallas:
        out = x.astype(compute_dtype) * scale + pe.astype(compute_dtype)[None, :, :]
        return out.astype(x.dtype)

    # ---- lane-dense 2-D layout: fold (seq_len, d_model) into the trailing axis ---
    feat = seq_len * dm
    feat_p = pl.cdiv(feat, 128) * 128              # pad to a multiple of 128 lanes
    x2d = x.reshape(batch, feat)
    pe_row = pe.reshape(1, feat).astype(compute_dtype)
    if feat_p != feat:
        x2d = jnp.pad(x2d, ((0, 0), (0, feat_p - feat)))
        pe_row = jnp.pad(pe_row, ((0, 0), (0, feat_p - feat)))

    # ---- tiling -------------------------------------------------------------------
    sublane = max(8, 32 // itemsize)               # 8 f32, 16 bf16, 32 int8/fp8
    padded_bytes = batch * feat_p * itemsize
    single_block_max = 2 << 20                     # above this, force >=2 grid steps
    if padded_bytes <= single_block_max:
        b_tile, f_tile = batch, feat_p             # one block, still <= 2 MiB
    else:
        eff_target = min(target_block_bytes, max(1 << 20, padded_bytes // 2))
        b_tile, f_tile = _choose_tiles(batch, feat_p, itemsize, sublane, eff_target)

    grid = (pl.cdiv(feat_p, f_tile), pl.cdiv(batch, b_tile))  # feat outer, batch inner

    # Explicit scoped-VMEM budget: 2 bufs x (in + out) blocks + resident pe + slack.
    blk_bytes = b_tile * f_tile * itemsize
    pe_bytes = f_tile * jnp.dtype(compute_dtype).itemsize
    vmem_needed = 4 * blk_bytes + 2 * pe_bytes + (2 << 20)
    vmem_limit = int(min(48 << 20, max(32 << 20, vmem_needed)))

    kernel = functools.partial(_pe_kernel, scale=scale)

    out2d = pl.pallas_call(
        kernel,
        out_shape=jax.ShapeDtypeStruct((batch, feat_p), x.dtype),
        grid=grid,
        in_specs=[
            pl.BlockSpec((b_tile, f_tile), lambda f, b: (b, f)),   # x tile
            pl.BlockSpec((1, f_tile), lambda f, b: (0, f)),        # pe row: constant
                                                                   # across inner batch
                                                                   # sweep -> no re-DMA
        ],
        out_specs=pl.BlockSpec((b_tile, f_tile), lambda f, b: (b, f)),
        compiler_params=pltpu.CompilerParams(
            dimension_semantics=("parallel", "parallel"),  # v7x can split over 2 TCs
            vmem_limit_bytes=vmem_limit,
        ),
    )(x2d, pe_row)

    if feat_p != feat:
        out2d = out2d[:, :feat]
    return out2d.reshape(batch, seq_len, dm)


if __name__ == "__main__":
    # parameters = {'seq_len': 8, 'd_model': 32}
    seq_len, d_model, batch = 8, 32, 2
    scale = math.sqrt(float(d_model))

    key = jax.random.PRNGKey(0)
    x = jax.random.normal(key, (batch, seq_len, d_model), dtype=jnp.float32)
    pe = make_pe_matrix(seq_len, d_model)

    # 1) Default dispatch: tiny input takes the fused plain-JAX fast path.
    out_fast = jax.block_until_ready(positional_encoder(x, pe, d_model))
    # 2) Forced Pallas path: exercises the kernel at the module's shape.
    out_pallas = jax.block_until_ready(
        positional_encoder(x, pe, d_model, force_pallas=True))

    ref = x * scale + pe[None, :, :]
    assert out_fast.shape == (batch, seq_len, d_model)
    assert out_pallas.shape == (batch, seq_len, d_model)
    assert jnp.allclose(out_fast, ref, atol=1e-5, rtol=1e-5)
    assert jnp.allclose(out_pallas, ref, atol=1e-5, rtol=1e-5)

    # 3) Larger shape exercising the tiled multi-block Pallas path (4 MiB f32).
    b2, s2, d2 = 32, 128, 256
    x2 = jax.random.normal(jax.random.PRNGKey(1), (b2, s2, d2), dtype=jnp.float32)
    pe2 = make_pe_matrix(s2, d2)
    out2 = jax.block_until_ready(positional_encoder(x2, pe2, d2))
    ref2 = x2 * math.sqrt(float(d2)) + pe2[None, :, :]
    assert jnp.allclose(out2, ref2, atol=1e-4, rtol=1e-5)

    print("KERNEL_OK")
</pallas_src>

<mosaic_0001>
module attributes {stable_mosaic.version = 11 : i64} {
  func.func @_pe_kernel(%arg0: i32, %arg1: i32, %arg2: memref<2x256xf32, #tpu.memory_space<vmem>>, %arg3: memref<1x256xf32, #tpu.memory_space<vmem>>, %arg4: memref<2x256xf32, #tpu.memory_space<vmem>>) attributes {dimension_semantics = [#tpu.dimension_semantics<parallel>, #tpu.dimension_semantics<parallel>], iteration_bounds = array<i64: 1, 1>, scalar_prefetch = 0 : i64, scratch_operands = 0 : i64, tpu.core_type = #tpu.core_type<tc>, window_params = [{transform_indices = @transform_0, window_bounds = array<i64: 2, 256>}, {transform_indices = @transform_1, window_bounds = array<i64: 1, 256>}, {transform_indices = @transform_2, window_bounds = array<i64: 2, 256>}]} {
    %c0 = arith.constant 0 : index
    %c0_0 = arith.constant 0 : index
    %0 = vector.load %arg2[%c0, %c0_0] : memref<2x256xf32, #tpu.memory_space<vmem>>, vector<2x256xf32>
    %cst = arith.constant 5.65685415 : f32
    %1 = vector.broadcast %cst : f32 to vector<2x256xf32>
    %2 = arith.mulf %0, %1 : vector<2x256xf32>
    %c0_1 = arith.constant 0 : index
    %c0_2 = arith.constant 0 : index
    %3 = vector.load %arg3[%c0_1, %c0_2] : memref<1x256xf32, #tpu.memory_space<vmem>>, vector<1x256xf32>
    %4 = vector.broadcast %3 : vector<1x256xf32> to vector<2x256xf32>
    %5 = arith.addf %2, %4 : vector<2x256xf32>
    %c0_3 = arith.constant 0 : index
    %c0_4 = arith.constant 0 : index
    %6 = vector.load %arg4[%c0_3, %c0_4] : memref<2x256xf32, #tpu.memory_space<vmem>>, vector<2x256xf32>
    tpu.vector_store %arg4[%c0_3, %c0_4], %5 {strides = array<i32>} : memref<2x256xf32, #tpu.memory_space<vmem>>, vector<2x256xf32>,
    return
  }
  func.func @transform_0(%arg0: i32, %arg1: i32) -> (i32, i32) {
    %c0_i32 = arith.constant 0 : i32
    return %arg1, %arg0 : i32, i32
  }
  func.func @transform_1(%arg0: i32, %arg1: i32) -> (i32, i32) {
    %c0_i32 = arith.constant 0 : i32
    %c0_i32_0 = arith.constant 0 : i32
    return %c0_i32, %arg0 : i32, i32
  }
  func.func @transform_2(%arg0: i32, %arg1: i32) -> (i32, i32) {
    %c0_i32 = arith.constant 0 : i32
    return %arg1, %arg0 : i32, i32
  }
}

</mosaic_0001>

<llo_original>
// kernel: tpu_custom_call.1
$region0: #{tpu_custom_call.1}
  #allocation0 [shape = 'u32[]', space=smem, size = 0x4, offset = 0x4, fixed_abs, tag = 'smem constant byte address 0x4 - core index']
  #allocation1 [shape = 'u32[72,128]{1,0:T(1,128)}', space=vmem, size = 0x9000, scoped, tag = 'internal scratch']
  %s0 = inlined_call_operand.hbm [shape: f32[2,256], index: 0, kind: input, shape index: {}]
  %s1 = inlined_call_operand.hbm [shape: f32[1,256], index: 1, kind: input, shape index: {}]
  %s2 = inlined_call_operand.hbm [shape: f32[2,256], index: 2, kind: output, shape index: {}]
  %s3 = sld [smem:[#allocation0]]
  $region26: #{tpu_custom_call.1} parent=0
    _
  %s5 = ssub.s32 1, %s3
  %s6 = scalar_select 0, %s5, %s3
  $region1: #{tpu_custom_call.1} parent=0
    #allocation2 [shape = 'u8[2048]{0}', space=vmem, size = 0x800, scoped, tag = 'input window, operand 0, single buffered']
    #allocation3 [shape = 's32[1]{0}', space=sflag, size = 0x4, scoped, tag = 'scoped memory for tpu_custom_call.1']
    #allocation4 [shape = 's32[1]{0}', space=sflag, size = 0x4, scoped, tag = 'scoped memory for tpu_custom_call.1']
    #allocation5 [shape = 'u8[1024]{0}', space=vmem, size = 0x400, scoped, tag = 'input window, operand 1, single buffered']
    #allocation6 [shape = 's32[1]{0}', space=sflag, size = 0x4, scoped, tag = 'scoped memory for tpu_custom_call.1']
    #allocation7 [shape = 'u8[2048]{0}', space=vmem, size = 0x800, scoped, tag = 'output window, operand 0, single buffered']
    %7 = vsyncpa [#allocation3], 0
    %8 = vsyncpa [#allocation6], 0
    %9 = vsyncpa [#allocation4], 0
    // Predicated region
    $region2: #{tpu_custom_call.1} parent=1 // pred_check
      _
    $region3: #{tpu_custom_call.1} parent=1 // pred_check_branch
      %11 = sbr.rel (0) target = $region5
    $region4: #{tpu_custom_call.1} parent=1 // pred_region
      %13 = vsyncadd [#allocation3], 0
      %s15 = sshll.u32 %s0, 4
      %s16 = int_to_ptr.hbm [resolvable:$true] %s15
      %s17 = sshll.u32 [#allocation2], 4
      %s18 = int_to_ptr.vmem [resolvable:$true] %s17
      %20 = dma.hbm_to_vmem [thread:$0]  %s16, 64, %s18, [#allocation3]
    $region5: #{tpu_custom_call.1} parent=1 // pred_fallthru
      _
    // Predicated region
    $region6: #{tpu_custom_call.1} parent=1 // pred_check
      _
    $region7: #{tpu_custom_call.1} parent=1 // pred_check_branch
      %22 = sbr.rel (0) target = $region9
    $region8: #{tpu_custom_call.1} parent=1 // pred_region
      %24 = vsyncadd [#allocation6], 0
      %s26 = sshll.u32 %s1, 4
      %s27 = int_to_ptr.hbm [resolvable:$true] %s26
      %s28 = sshll.u32 [#allocation5], 4
      %s29 = int_to_ptr.vmem [resolvable:$true] %s28
      %31 = dma.hbm_to_vmem [thread:$0]  %s27, 32, %s29, [#allocation6]
    $region9: #{tpu_custom_call.1} parent=1 // pred_fallthru
      _
    // Predicated region
    $region10: #{tpu_custom_call.1} parent=1 // pred_check
      _
    $region11: #{tpu_custom_call.1} parent=1 // pred_check_branch
      %33 = sbr.rel (0) target = $region13
    $region12: #{tpu_custom_call.1} parent=1 // pred_region
      %35 = dma.done [#allocation3], 64
    $region13: #{tpu_custom_call.1} parent=1 // pred_fallthru
      _
    // Predicated region
    $region14: #{tpu_custom_call.1} parent=1 // pred_check
      _
    $region15: #{tpu_custom_call.1} parent=1 // pred_check_branch
      %37 = sbr.rel (0) target = $region17
    $region16: #{tpu_custom_call.1} parent=1 // pred_region
      %39 = dma.done [#allocation6], 32
    $region17: #{tpu_custom_call.1} parent=1 // pred_fallthru
      _
    %v40 = vld [vmem:[#allocation2] sm:$0xf]
    %v41 = vmul.f32 %v40, 5.656854
    %v42 = vld [vmem:[#allocation5] sm:$0x3]
    %v44 = vperm.slane %v42, 0
    %v45 = vperm.slane %v42, 1
    %v46 = vrot.slane %v45, 6
    %vm47 = vcmask 1041408
    %v48 = vsel %vm47, %v44, %v46
    %v50 = vadd.f32 %v41, %v48
    %51 = vst [vmem:[#allocation7] sm:$0xf] %v50
    // Predicated region
    $region18: #{tpu_custom_call.1} parent=1 // pred_check
      _
    $region19: #{tpu_custom_call.1} parent=1 // pred_check_branch
      %53 = sbr.rel (0) target = $region21
    $region20: #{tpu_custom_call.1} parent=1 // pred_region
      %55 = vsyncadd [#allocation4], 0
      %s57 = sshll.u32 [#allocation7], 4
      %s58 = int_to_ptr.vmem [resolvable:$true] %s57
      %s59 = sshll.u32 %s2, 4
      %s60 = int_to_ptr.hbm [resolvable:$true] %s59
      %62 = dma.vmem_to_hbm [thread:$0]  %s58, 64, %s60, [#allocation4]
    $region21: #{tpu_custom_call.1} parent=1 // pred_fallthru
      _
    // Predicated region
    $region22: #{tpu_custom_call.1} parent=1 // pred_check
      _
    $region23: #{tpu_custom_call.1} parent=1 // pred_check_branch
      %64 = sbr.rel (0) target = $region25
    $region24: #{tpu_custom_call.1} parent=1 // pred_region
      %66 = dma.done [#allocation4], 64
    $region25: #{tpu_custom_call.1} parent=1 // pred_fallthru
      _
    %67 = vsyncpa [#allocation3], 1
    %68 = vsyncpa [#allocation6], 1
    %69 = vsyncpa [#allocation4], 1

</llo_original>
